<compile_context>
chip_gen: v5e
topology: v5e:2x2
jax: 0.10.0
libtpu: 0.0.40
codegen_flags: <defaults>
</compile_context>

<pallas_src>
import functools

import jax
import jax.numpy as jnp
from jax.experimental import pallas as pl
from jax.experimental.pallas import tpu as pltpu


def _round_up(x, m):
    return ((x + m - 1) // m) * m


def _patch_embed_kernel(x_ref, w_ref, b_ref, o_ref):
    # x_ref: (tm, K) patch tile
    # w_ref: (K, tn) weight tile (VMEM-resident across the M axis)
    # b_ref: (1, tn) f32 bias tile
    # o_ref: (tm, tn)
    acc = jnp.dot(x_ref[...], w_ref[...], preferred_element_type=jnp.float32)
    o_ref[...] = (acc + b_ref[...]).astype(o_ref.dtype)


def patch_embedding(x, weight, bias, patch_size, *, tm=1024, tn=None,
                    compute_dtype=None, out_dtype=None):
    """ViT patch embedding == conv2d(k=s=P).flatten(2,3).permute(0,2,1).

    Args:
      x:      (B, C, H, W) NCHW, like PyTorch.
      weight: (E, C, P, P) conv weight (nn.Conv2d layout).
      bias:   (E,) conv bias.
      patch_size: P.
      tm: requested M tile (rows of patches per step).
      tn: requested E tile; None (default) = cover full 128-padded E in one
          tile when it fits the VMEM budget (single pass over patches).
      compute_dtype: optional dtype (e.g. jnp.bfloat16) for the matmul inputs;
          accumulation stays float32.
      out_dtype: output dtype; default = dtype of x (before any compute cast).

    Returns:
      (B, Hp*Wp, E) array of out_dtype.
    """
    B, C, H, W = x.shape
    E = weight.shape[0]
    P = patch_size
    assert H % P == 0 and W % P == 0, "image size must be divisible by patch size"
    Hp, Wp = H // P, W // P
    N = Hp * Wp
    M = B * N
    K = C * P * P

    orig_dtype = x.dtype
    if out_dtype is None:
        out_dtype = orig_dtype

    # Cast BEFORE the im2col reshape/transpose: if the producer fails to fuse
    # into the pallas_call input, the HBM round-trip happens at narrow width.
    if compute_dtype is not None:
        x = x.astype(compute_dtype)
        weight = weight.astype(compute_dtype)

    # --- patch extraction (feature order (C, ph, pw) to match Conv2d weight) ---
    # (B, C, Hp, P, Wp, P) -> (B, Hp, Wp, C, P, P) -> (M, K)
    patches = x.reshape(B, C, Hp, P, Wp, P).transpose(0, 2, 4, 1, 3, 5)
    patches = patches.reshape(M, K)
    w_mat = weight.reshape(E, K).T                       # (K, E)
    b_mat = bias.astype(jnp.float32).reshape(1, E)       # f32 bias add

    in_bytes = patches.dtype.itemsize
    w_bytes = w_mat.dtype.itemsize
    o_bytes = jnp.dtype(out_dtype).itemsize
    m_align = 16 if in_bytes < 4 else 8                  # sublane packing

    # --- tile sizes: prefer one lane-dense E tile (single pass over patches) ---
    e128 = _round_up(E, 128)
    tn_eff = e128 if tn is None else min(e128, _round_up(tn, 128))
    tm_eff = min(_round_up(tm, m_align), _round_up(M, m_align))

    vmem_budget = 28 * 1024 * 1024  # double-buffered; safe on v5e/v6e/v7x

    def tile_bytes(tm_, tn_):
        # Pallas double-buffers every tiled operand.
        return 2 * (tm_ * K * in_bytes + K * tn_ * w_bytes
                    + tn_ * 4 + tm_ * tn_ * o_bytes)

    while tile_bytes(tm_eff, tn_eff) > vmem_budget and tm_eff > 8 * m_align:
        tm_eff = max(m_align, _round_up(tm_eff // 2, m_align))
    while tile_bytes(tm_eff, tn_eff) > vmem_budget and tn_eff > 128:
        tn_eff = max(128, _round_up(tn_eff // 2, 128))

    e_pad = _round_up(E, tn_eff)
    num_e = e_pad // tn_eff
    num_m = pl.cdiv(M, tm_eff)   # NO pad of patches: ragged last block is masked

    # Only the (small) weight / bias get padded on E for lane-dense stores.
    if e_pad != E:
        w_mat = jnp.pad(w_mat, ((0, 0), (0, e_pad - E)))
        b_mat = jnp.pad(b_mat, ((0, 0), (0, e_pad - E)))

    vmem_limit = int(min(60 * 1024 * 1024,
                         max(tile_bytes(tm_eff, tn_eff) + 4 * 1024 * 1024,
                             16 * 1024 * 1024)))

    if num_e == 1:
        # 1-D grid over M -> megacore shards M across TensorCores on v7x.
        grid = (num_m,)
        in_specs = [
            pl.BlockSpec((tm_eff, K), lambda i: (i, 0)),      # patches
            pl.BlockSpec((K, tn_eff), lambda i: (0, 0)),      # weight (resident)
            pl.BlockSpec((1, tn_eff), lambda i: (0, 0)),      # bias
        ]
        out_specs = pl.BlockSpec((tm_eff, tn_eff), lambda i: (i, 0))
        dim_sem = ("parallel",)
    else:
        # E outermost, M innermost: weight block index is constant across
        # consecutive grid steps -> stays VMEM-resident (no re-DMA).
        grid = (num_e, num_m)
        in_specs = [
            pl.BlockSpec((tm_eff, K), lambda j, i: (i, 0)),
            pl.BlockSpec((K, tn_eff), lambda j, i: (0, j)),
            pl.BlockSpec((1, tn_eff), lambda j, i: (0, j)),
        ]
        out_specs = pl.BlockSpec((tm_eff, tn_eff), lambda j, i: (i, j))
        dim_sem = ("parallel", "parallel")

    out = pl.pallas_call(
        _patch_embed_kernel,
        out_shape=jax.ShapeDtypeStruct((M, e_pad), out_dtype),
        grid_spec=pl.GridSpec(
            grid=grid,
            in_specs=in_specs,
            out_specs=out_specs,
        ),
        compiler_params=pltpu.CompilerParams(
            # No reduction grid axis (K is whole inside the block): every grid
            # point owns an independent output tile.
            dimension_semantics=dim_sem,
            vmem_limit_bytes=vmem_limit,
            # Let XLA fuse the im2col reshape/transpose (+cast) into the
            # kernel's patches input so it need not round-trip HBM.
            allow_input_fusion=[True, False, False],
        ),
    )(patches, w_mat, b_mat)

    out = out[:, :E]
    return out.reshape(B, N, E)


def _reference(x, weight, bias, patch_size):
    # Pure-JAX reference: strided conv via lax.conv_general_dilated, NCHW.
    y = jax.lax.conv_general_dilated(
        x, weight,
        window_strides=(patch_size, patch_size),
        padding="VALID",
        dimension_numbers=("NCHW", "OIHW", "NCHW"),
    ) + bias[None, :, None, None]
    B, E, Hp, Wp = y.shape
    return y.reshape(B, E, Hp * Wp).transpose(0, 2, 1)


if __name__ == "__main__":
    # Small shapes: batch=2, in_channels=4, image 16x16, patch_size=4, embed=32
    B, C, H, W = 2, 4, 16, 16
    P, E = 4, 32

    key = jax.random.PRNGKey(0)
    kx, kw, kb = jax.random.split(key, 3)
    x = jax.random.normal(kx, (B, C, H, W), dtype=jnp.float32)
    weight = jax.random.normal(kw, (E, C, P, P), dtype=jnp.float32) * 0.02
    bias = jax.random.normal(kb, (E,), dtype=jnp.float32) * 0.02

    ref = _reference(x, weight, bias, P)
    Np = (H // P) * (W // P)

    # f32 path (matches PyTorch module semantics exactly).
    fn = jax.jit(functools.partial(patch_embedding, patch_size=P))
    out = fn(x, weight, bias)
    jax.block_until_ready(out)
    assert out.shape == (B, Np, E), out.shape
    assert out.dtype == jnp.float32
    assert jnp.allclose(out, ref, atol=1e-4, rtol=1e-4), (
        float(jnp.max(jnp.abs(out - ref))))

    # bf16-input path (v6e/v7x MXU throughput), f32 accumulation, f32 output.
    fn_bf16 = jax.jit(functools.partial(
        patch_embedding, patch_size=P, compute_dtype=jnp.bfloat16))
    out_bf16 = fn_bf16(x, weight, bias)
    jax.block_until_ready(out_bf16)
    assert out_bf16.shape == (B, Np, E)
    assert jnp.allclose(out_bf16, ref, atol=5e-2, rtol=5e-2), (
        float(jnp.max(jnp.abs(out_bf16 - ref))))

    # bf16-input + bf16-output path (halves output writeback when HBM-bound).
    fn_bf16_out = jax.jit(functools.partial(
        patch_embedding, patch_size=P, compute_dtype=jnp.bfloat16,
        out_dtype=jnp.bfloat16))
    out_bf16_o = fn_bf16_out(x, weight, bias)
    jax.block_until_ready(out_bf16_o)
    assert out_bf16_o.shape == (B, Np, E)
    assert out_bf16_o.dtype == jnp.bfloat16
    assert jnp.allclose(out_bf16_o.astype(jnp.float32), ref,
                        atol=1e-1, rtol=1e-1), (
        float(jnp.max(jnp.abs(out_bf16_o.astype(jnp.float32) - ref))))

    print("KERNEL_OK")
</pallas_src>

<mosaic_0001>
module attributes {stable_mosaic.version = 11 : i64} {
  func.func @_patch_embed_kernel(%arg0: i32, %arg1: memref<32x64xf32, #tpu.memory_space<vmem>>, %arg2: memref<64x128xf32, #tpu.memory_space<vmem>>, %arg3: memref<1x128xf32, #tpu.memory_space<vmem>>, %arg4: memref<32x128xf32, #tpu.memory_space<vmem>>) attributes {dimension_semantics = [#tpu.dimension_semantics<parallel>], iteration_bounds = array<i64: 1>, scalar_prefetch = 0 : i64, scratch_operands = 0 : i64, tpu.core_type = #tpu.core_type<tc>, window_params = [{transform_indices = @transform_0, window_bounds = array<i64: 32, 64>}, {pipeline_mode = #tpu.pipeline_mode<synchronous>, transform_indices = @transform_1, window_bounds = array<i64: 64, 128>}, {pipeline_mode = #tpu.pipeline_mode<synchronous>, transform_indices = @transform_2, window_bounds = array<i64: 1, 128>}, {transform_indices = @transform_3, window_bounds = array<i64: 32, 128>}]} {
    %c0 = arith.constant 0 : index
    %c0_0 = arith.constant 0 : index
    %0 = vector.load %arg1[%c0, %c0_0] : memref<32x64xf32, #tpu.memory_space<vmem>>, vector<32x64xf32>
    %c0_1 = arith.constant 0 : index
    %c0_2 = arith.constant 0 : index
    %1 = vector.load %arg2[%c0_1, %c0_2] : memref<64x128xf32, #tpu.memory_space<vmem>>, vector<64x128xf32>
    %cst = arith.constant dense<0.000000e+00> : vector<32x128xf32>
    %2 = tpu.matmul %0, %1, %cst {dimension_numbers = #tpu.dot_dimension_numbers<[1], [0], [0], [1], [0, 0, 1, 1], [], []>} : vector<32x64xf32>, vector<64x128xf32>, vector<32x128xf32> -> vector<32x128xf32>
    %c0_3 = arith.constant 0 : index
    %c0_4 = arith.constant 0 : index
    %3 = vector.load %arg3[%c0_3, %c0_4] : memref<1x128xf32, #tpu.memory_space<vmem>>, vector<1x128xf32>
    %4 = vector.broadcast %3 : vector<1x128xf32> to vector<32x128xf32>
    %5 = arith.addf %2, %4 : vector<32x128xf32>
    %c0_5 = arith.constant 0 : index
    %c0_6 = arith.constant 0 : index
    %6 = vector.load %arg4[%c0_5, %c0_6] : memref<32x128xf32, #tpu.memory_space<vmem>>, vector<32x128xf32>
    tpu.vector_store %arg4[%c0_5, %c0_6], %5 {strides = array<i32>} : memref<32x128xf32, #tpu.memory_space<vmem>>, vector<32x128xf32>,
    return
  }
  func.func @transform_0(%arg0: i32) -> (i32, i32) {
    %c0_i32 = arith.constant 0 : i32
    %c0_i32_0 = arith.constant 0 : i32
    return %arg0, %c0_i32 : i32, i32
  }
  func.func @transform_1(%arg0: i32) -> (i32, i32) {
    %c0_i32 = arith.constant 0 : i32
    %c0_i32_0 = arith.constant 0 : i32
    %c0_i32_1 = arith.constant 0 : i32
    return %c0_i32, %c0_i32_0 : i32, i32
  }
  func.func @transform_2(%arg0: i32) -> (i32, i32) {
    %c0_i32 = arith.constant 0 : i32
    %c0_i32_0 = arith.constant 0 : i32
    %c0_i32_1 = arith.constant 0 : i32
    return %c0_i32, %c0_i32_0 : i32, i32
  }
  func.func @transform_3(%arg0: i32) -> (i32, i32) {
    %c0_i32 = arith.constant 0 : i32
    %c0_i32_0 = arith.constant 0 : i32
    return %arg0, %c0_i32 : i32, i32
  }
}

</mosaic_0001>

<llo_original>
// kernel: patch_embedding.1
$region0: #{patch_embedding.1}
  #allocation0 [shape = 'u32[]', space=smem, size = 0x4, offset = 0x4, fixed_abs, tag = 'smem constant byte address 0x4 - core index']
  #allocation1 [shape = 'u32[72,128]{1,0:T(1,128)}', space=vmem, size = 0x9000, scoped, tag = 'internal scratch']
  %s0 = inlined_call_operand.vmem [shape: f32[32,64], index: 0, kind: input, shape index: {}]
  %s1 = inlined_call_operand.vmem [shape: f32[64,128], index: 1, kind: input, shape index: {}]
  %s2 = inlined_call_operand.vmem [shape: f32[1,128], index: 2, kind: input, shape index: {}]
  %s3 = inlined_call_operand.hbm [shape: f32[32,128], index: 3, kind: output, shape index: {}]
  %s4 = sld [smem:[#allocation0]]
  $region22: #{patch_embedding.1} parent=0
    _
  %s6 = ssub.s32 1, %s4
  %s7 = scalar_select 0, %s6, %s4
  $region1: #{patch_embedding.1} parent=0
    #allocation2 [shape = 'u8[16384]{0}', space=vmem, size = 0x4000, scoped, tag = 'output window, operand 0, single buffered']
    #allocation3 [shape = 's32[1]{0}', space=sflag, size = 0x4, scoped, tag = 'scoped memory for patch_embedding.1']
    %8 = vsyncpa [#allocation3], 0
    // Predicated region
    $region2: #{patch_embedding.1} parent=1 // pred_check
      _
    $region3: #{patch_embedding.1} parent=1 // pred_check_branch
      %10 = sbr.rel (0) target = $region5
    $region4: #{patch_embedding.1} parent=1 // pred_region
      _
    $region5: #{patch_embedding.1} parent=1 // pred_fallthru
      _
    // Predicated region
    $region6: #{patch_embedding.1} parent=1 // pred_check
      _
    $region7: #{patch_embedding.1} parent=1 // pred_check_branch
      %12 = sbr.rel (0) target = $region9
    $region8: #{patch_embedding.1} parent=1 // pred_region
      _
    $region9: #{patch_embedding.1} parent=1 // pred_fallthru
      _
    // Predicated region
    $region10: #{patch_embedding.1} parent=1 // pred_check
      _
    $region11: #{patch_embedding.1} parent=1 // pred_check_branch
      %14 = sbr.rel (0) target = $region13
    $region12: #{patch_embedding.1} parent=1 // pred_region
      _
    $region13: #{patch_embedding.1} parent=1 // pred_fallthru
      _
    %v15 = vld [vmem:[%s0] sm:$0xff]
    %v16 = vld [vmem:[%s0 + $0x8] sm:$0xff]
    %v17 = vld [vmem:[%s0 + $0x10] sm:$0xff]
    %v18 = vld [vmem:[%s0 + $0x18] sm:$0xff]
    %v19 = vld [vmem:[%s1] sm:$0xff]
    %v20 = vld [vmem:[%s1 + $0x8] sm:$0xff]
    %v21 = vld [vmem:[%s1 + $0x10] sm:$0xff]
    %v22 = vld [vmem:[%s1 + $0x18] sm:$0xff]
    %v23 = vld [vmem:[%s1 + $0x20] sm:$0xff]
    %v24 = vld [vmem:[%s1 + $0x28] sm:$0xff]
    %v25 = vld [vmem:[%s1 + $0x30] sm:$0xff]
    %v26 = vld [vmem:[%s1 + $0x38] sm:$0xff]
    %v27 = vld [vmem:[%s2] sm:$0x1]
    %v29 = vperm.slane %v27, 0
    %vm31 = vcmask 523264
    %v33 = vsel %vm31, %v15, 0
    %v36 = vsel %vm31, %v16, 0
    %v39 = vsel %vm31, %v17, 0
    %v42 = vsel %vm31, %v18, 0
    %44 = vmatpush.msra.mxu0 0.0
    %45 = vmatpush.msra.mxu0 0.0
    %46 = vmatpush.msra.mxu0 0.0
    %47 = vmatpush.msra.mxu0 0.0
    %48 = vmatpush.msra.mxu0 0.0
    %49 = vmatpush.msra.mxu0 0.0
    %50 = vmatpush.msra.mxu0 0.0
    %51 = vmatpush.msra.mxu0 0.0
    %52 = vmatpush.msra.mxu0 %v26
    %53 = vmatpush.msra.mxu0 %v25
    %54 = vmatpush.msra.mxu0 %v24
    %55 = vmatpush.msra.mxu0 %v23
    %56 = vmatpush.msra.mxu0 %v22
    %57 = vmatpush.msra.mxu0 %v21
    %58 = vmatpush.msra.mxu0 %v20
    %59 = vmatpush.msra.mxu0 %v19
    %60 = vmatmul.f32.gmra.mxu0 %v33
    %v61 = vpop.f32.mrf.mxu0
    %v62 = vadd.f32 %v29, %v61
    %63 = vmatmul.f32.gmra.mxu0 %v36
    %v64 = vpop.f32.mrf.mxu0
    %v65 = vadd.f32 %v29, %v64
    %66 = vmatmul.f32.gmra.mxu0 %v39
    %v67 = vpop.f32.mrf.mxu0
    %v68 = vadd.f32 %v29, %v67
    %69 = vmatmul.f32.gmra.mxu0 %v42
    %v70 = vpop.f32.mrf.mxu0
    %v71 = vadd.f32 %v29, %v70
    %72 = vdwg.mxu0
    %73 = vst [vmem:[#allocation2] sm:$0xff] %v62
    %74 = vst [vmem:[#allocation2 + $0x8] sm:$0xff] %v65
    %75 = vst [vmem:[#allocation2 + $0x10] sm:$0xff] %v68
    %76 = vst [vmem:[#allocation2 + $0x18] sm:$0xff] %v71
    // Predicated region
    $region14: #{patch_embedding.1} parent=1 // pred_check
      _
    $region15: #{patch_embedding.1} parent=1 // pred_check_branch
      %78 = sbr.rel (0) target = $region17
    $region16: #{patch_embedding.1} parent=1 // pred_region
      %80 = vsyncadd [#allocation3], 0
      %s81 = sshll.u32 [#allocation2], 4
      %s82 = int_to_ptr.vmem [resolvable:$true] %s81
      %s83 = sshll.u32 %s3, 4
      %s84 = int_to_ptr.hbm [resolvable:$true] %s83
      %89 = dma.vmem_to_hbm [thread:$0]  %s82, 512, %s84, [#allocation3], 128, 128, 8
    $region17: #{patch_embedding.1} parent=1 // pred_fallthru
      _
    // Predicated region
    $region18: #{patch_embedding.1} parent=1 // pred_check
      _
    $region19: #{patch_embedding.1} parent=1 // pred_check_branch
      %91 = sbr.rel (0) target = $region21
    $region20: #{patch_embedding.1} parent=1 // pred_region
      %93 = dma.done [#allocation3], 512
    $region21: #{patch_embedding.1} parent=1 // pred_fallthru
      _
    %94 = vsyncpa [#allocation3], 1

</llo_original>
